<compile_context>
chip_gen: v6e
topology: v6e:2x2x1
jax: 0.10.0
libtpu: 0.0.40
codegen_flags: <defaults>
</compile_context>

<pallas_src>
from math import sqrt

import jax
import jax.numpy as jnp
from jax.experimental import pallas as pl
from jax.experimental.pallas import tpu as pltpu


_LANE_CANDIDATES = (1024, 512, 256, 128)  # lane-dense widths (multiples of 128)


def _device_kind() -> str:
    try:
        return jax.devices()[0].device_kind.lower()
    except Exception:
        return ""


def _target_block_bytes(kind: str) -> int:
    # ~8 MiB on v7x (fast HBM, thin per-step budget), ~4 MiB on v6e,
    # ~2 MiB elsewhere (v5e scoped-VMEM default is only 16 MiB).
    if "v7" in kind:
        return 8 << 20
    if "v6" in kind:
        return 4 << 20
    return 2 << 20


def _make_preact_kernel(scale: float, compute_in_f32: bool):
    def kernel(x_ref, o_ref):
        x = x_ref[...]
        if compute_in_f32:
            # v5e path for sub-32-bit floats (no bf16 VPU).
            o_ref[...] = (x.astype(jnp.float32) * scale).astype(o_ref.dtype)
        else:
            # Native-dtype multiply: no f32 intermediate, less vreg pressure.
            o_ref[...] = x * jnp.asarray(scale, dtype=x.dtype)

    return kernel


def preact(x: jax.Array, dim: int) -> jax.Array:
    """Applies y = (2 / sqrt(dim)) * x elementwise (PreAct.forward) on TPU."""
    if dim <= 0:
        raise ValueError("dim must be positive")
    # Note: intended for floating-point inputs (matches the PyTorch module).
    orig_shape = x.shape
    orig_dtype = x.dtype
    scale = 2.0 / sqrt(dim)

    total = x.size
    if total == 0:
        return x

    kind = _device_kind()
    itemsize = jnp.dtype(orig_dtype).itemsize

    # Widest lane-dense last dim that divides total exactly -> no padding.
    lanes = None
    for cand in _LANE_CANDIDATES:
        if total % cand == 0:
            lanes = cand
            break

    pad = 0
    flat = x.reshape(-1)
    if lanes is None:
        # Ragged total: minimal pad to the next multiple of 128 (rare path).
        lanes = 128
        padded = pl.cdiv(total, lanes) * lanes
        pad = padded - total
        flat = jnp.pad(flat, (0, pad))
    rows = flat.size // lanes
    x2d = flat.reshape(rows, lanes)

    # Keep block bytes ~constant across dtypes and chips.
    block_bytes = _target_block_bytes(kind)
    target_rows = max(8, block_bytes // (lanes * itemsize))
    target_rows = (target_rows // 8) * 8  # sublane-aligned

    if rows <= 8:
        tile_rows = rows  # tiny tensor: single full-array block
    else:
        tile_rows = min(target_rows, (rows // 8) * 8)
        # Guarantee >= 2 grid steps so v7x megacore shards across both TCs.
        if pl.cdiv(rows, tile_rows) < 2 and rows >= 16:
            half = (rows + 1) // 2
            tile_rows = max(8, ((half + 7) // 8) * 8)
    grid = (pl.cdiv(rows, tile_rows),)

    # Upcast to f32 only where the VPU lacks bf16 (v5e and older).
    compute_in_f32 = itemsize < 4 and not ("v6" in kind or "v7" in kind)

    # 1 input + 1 output, double-buffered => 4 resident blocks; add headroom.
    vmem_limit = int(min(4 * tile_rows * lanes * itemsize + (8 << 20), 48 << 20))

    out = pl.pallas_call(
        _make_preact_kernel(scale, compute_in_f32),
        out_shape=jax.ShapeDtypeStruct((rows, lanes), orig_dtype),
        grid_spec=pltpu.PrefetchScalarGridSpec(
            num_scalar_prefetch=0,
            grid=grid,
            in_specs=[pl.BlockSpec((tile_rows, lanes), lambda i: (i, 0))],
            out_specs=pl.BlockSpec((tile_rows, lanes), lambda i: (i, 0)),
        ),
        compiler_params=pltpu.CompilerParams(
            dimension_semantics=("parallel",),
            vmem_limit_bytes=vmem_limit,
        ),
    )(x2d)

    out_flat = out.reshape(-1)
    if pad:
        out_flat = out_flat[:total]
    return out_flat.reshape(orig_shape)


if __name__ == "__main__":
    key = jax.random.PRNGKey(0)

    # Primary check: NCHW input, dim = C (matches the PyTorch module's usage).
    N, C, H, W = 2, 4, 16, 16
    dim = C
    x = jax.random.normal(key, (N, C, H, W), dtype=jnp.float32)
    y = jax.block_until_ready(preact(x, dim))
    y_ref = (2.0 / sqrt(dim)) * x
    assert y.shape == x.shape and y.dtype == x.dtype
    assert jnp.allclose(y, y_ref, rtol=1e-6, atol=1e-6)

    # Mid-size tensor: exercises the multi-step (>=2 block) grid path.
    key, k2 = jax.random.split(key)
    x2 = jax.random.normal(k2, (8, 4, 64, 64), dtype=jnp.float32)
    y2 = jax.block_until_ready(preact(x2, 4))
    assert jnp.allclose(y2, (2.0 / sqrt(4)) * x2, rtol=1e-6, atol=1e-6)

    # Ragged element count: exercises the minimal-pad fallback path.
    key, k3 = jax.random.split(key)
    x3 = jax.random.normal(k3, (3, 5, 7), dtype=jnp.float32)
    y3 = jax.block_until_ready(preact(x3, 5))
    assert jnp.allclose(y3, (2.0 / sqrt(5)) * x3, rtol=1e-6, atol=1e-6)

    print("KERNEL_OK")
</pallas_src>

<mosaic_0001>
module attributes {stable_mosaic.version = 11 : i64} {
  func.func @kernel(%arg0: i32, %arg1: memref<2x1024xf32, #tpu.memory_space<vmem>>, %arg2: memref<2x1024xf32, #tpu.memory_space<vmem>>) attributes {dimension_semantics = [#tpu.dimension_semantics<parallel>], iteration_bounds = array<i64: 1>, scalar_prefetch = 0 : i64, scratch_operands = 0 : i64, tpu.core_type = #tpu.core_type<tc>, window_params = [{transform_indices = @transform_0, window_bounds = array<i64: 2, 1024>}, {transform_indices = @transform_1, window_bounds = array<i64: 2, 1024>}]} {
    %c0 = arith.constant 0 : index
    %c0_0 = arith.constant 0 : index
    %0 = vector.load %arg1[%c0, %c0_0] : memref<2x1024xf32, #tpu.memory_space<vmem>>, vector<2x1024xf32>
    %cst = arith.constant 1.000000e+00 : f32
    %1 = vector.broadcast %cst : f32 to vector<2x1024xf32>
    %2 = arith.mulf %0, %1 : vector<2x1024xf32>
    %c0_1 = arith.constant 0 : index
    %c0_2 = arith.constant 0 : index
    %3 = vector.load %arg2[%c0_1, %c0_2] : memref<2x1024xf32, #tpu.memory_space<vmem>>, vector<2x1024xf32>
    tpu.vector_store %arg2[%c0_1, %c0_2], %2 {strides = array<i32>} : memref<2x1024xf32, #tpu.memory_space<vmem>>, vector<2x1024xf32>,
    return
  }
  func.func @transform_0(%arg0: i32) -> (i32, i32) {
    %c0_i32 = arith.constant 0 : i32
    %c0_i32_0 = arith.constant 0 : i32
    return %arg0, %c0_i32 : i32, i32
  }
  func.func @transform_1(%arg0: i32) -> (i32, i32) {
    %c0_i32 = arith.constant 0 : i32
    %c0_i32_0 = arith.constant 0 : i32
    return %arg0, %c0_i32 : i32, i32
  }
}

</mosaic_0001>

<llo_original>
// kernel: tpu_custom_call.1
$region0: #{tpu_custom_call.1}
  #allocation0 [shape = 'u32[]', space=smem, size = 0x4, offset = 0x4, fixed_abs, tag = 'smem constant byte address 0x4 - core index']
  #allocation1 [shape = 'u32[144,128]{1,0:T(1,128)}', space=vmem, size = 0x12000, scoped, tag = 'internal scratch']
  %s0 = inlined_call_operand.hbm [shape: f32[2,1024], index: 0, kind: input, shape index: {}]
  %s1 = inlined_call_operand.hbm [shape: f32[2,1024], index: 1, kind: output, shape index: {}]
  %s2 = sld [smem:[#allocation0]]
  $region18: #{tpu_custom_call.1} parent=0
    _
  %s4 = ssub.s32 1, %s2
  %s5 = scalar_select 0, %s4, %s2
  $region1: #{tpu_custom_call.1} parent=0
    #allocation2 [shape = 'u8[8192]{0}', space=vmem, size = 0x2000, scoped, tag = 'input window, operand 0, single buffered']
    #allocation3 [shape = 's32[1]{0}', space=sflag, size = 0x4, scoped, tag = 'scoped memory for tpu_custom_call.1']
    #allocation4 [shape = 's32[1]{0}', space=sflag, size = 0x4, scoped, tag = 'scoped memory for tpu_custom_call.1']
    #allocation5 [shape = 'u8[8192]{0}', space=vmem, size = 0x2000, scoped, tag = 'output window, operand 0, single buffered']
    %6 = vsyncpa [#allocation3], 0
    %7 = vsyncpa [#allocation4], 0
    // Predicated region
    $region2: #{tpu_custom_call.1} parent=1 // pred_check
      _
    $region3: #{tpu_custom_call.1} parent=1 // pred_check_branch
      %9 = sbr.rel (0) target = $region5
    $region4: #{tpu_custom_call.1} parent=1 // pred_region
      %s11 = ssub.s32 256, 256
      %12 = vsyncadd [#allocation3], %s11
      %s14 = sshll.u32 [#allocation2], 4
      %s15 = int_to_ptr.vmem [resolvable:$true] %s14
      %17 = dma.hbm_to_vmem [thread:$0]  %s0, 256, %s15, [#allocation3]
    $region5: #{tpu_custom_call.1} parent=1 // pred_fallthru
      _
    // Predicated region
    $region6: #{tpu_custom_call.1} parent=1 // pred_check
      _
    $region7: #{tpu_custom_call.1} parent=1 // pred_check_branch
      %19 = sbr.rel (0) target = $region9
    $region8: #{tpu_custom_call.1} parent=1 // pred_region
      %20 = dma.done [#allocation3], 256
    $region9: #{tpu_custom_call.1} parent=1 // pred_fallthru
      _
    %v21 = vld [vmem:[#allocation2] sm:$0xff]
    %v22 = vld [vmem:[#allocation2 + $0x8] sm:$0xff]
    %23 = vst [vmem:[#allocation5] sm:$0xff] %v21
    %24 = vst [vmem:[#allocation5 + $0x8] sm:$0xff] %v22
    // Predicated region
    $region10: #{tpu_custom_call.1} parent=1 // pred_check
      _
    $region11: #{tpu_custom_call.1} parent=1 // pred_check_branch
      %26 = sbr.rel (0) target = $region13
    $region12: #{tpu_custom_call.1} parent=1 // pred_region
      %s28 = ssub.s32 256, 256
      %29 = vsyncadd [#allocation4], %s28
      %s31 = sshll.u32 [#allocation5], 4
      %s32 = int_to_ptr.vmem [resolvable:$true] %s31
      %34 = dma.vmem_to_hbm [thread:$0]  %s32, 256, %s1, [#allocation4]
    $region13: #{tpu_custom_call.1} parent=1 // pred_fallthru
      _
    // Predicated region
    $region14: #{tpu_custom_call.1} parent=1 // pred_check
      _
    $region15: #{tpu_custom_call.1} parent=1 // pred_check_branch
      %36 = sbr.rel (0) target = $region17
    $region16: #{tpu_custom_call.1} parent=1 // pred_region
      %37 = dma.done [#allocation4], 256
    $region17: #{tpu_custom_call.1} parent=1 // pred_fallthru
      _
    %38 = vsyncpa [#allocation3], 1
    %39 = vsyncpa [#allocation4], 1

</llo_original>
